<compile_context>
chip_gen: v5e
topology: v5e:2x2
jax: 0.10.0
libtpu: 0.0.40
codegen_flags: <defaults>
</compile_context>

<pallas_src>
import numpy as np
import jax
import jax.numpy as jnp
from jax import lax
from jax.experimental import pallas as pl
from jax.experimental.pallas import tpu as pltpu

SPEED_OF_SOUND = 343.0  # m/s
LANES = 128             # lane width of a vreg
SUB = 8                 # sublane rows processed per inner-loop iteration (1 vreg / tile)
MAX_BT = 128            # max sublane rows per grid step (=> 16384 batch rows / step)


class LSPallas:
    def __init__(self, sampling_rate: int, relative: bool = True):
        self.sampling_rate = sampling_rate
        self.relative = relative

    # ------------------------------------------------------------------ init
    def init(self, receivers, room_dimensions) -> None:
        receivers = np.asarray(receivers, dtype=np.float32)          # (R, 3)
        R = receivers.shape[0]
        combos = np.array([(a, b) for a in range(R) for b in range(a + 1, R)],
                          dtype=np.int32)                            # (P, 2) torch.combinations order
        self.rec_centroid = receivers.mean(axis=0)                   # (3,)
        rc = receivers - self.rec_centroid                           # centered receivers
        pairs = rc[combos]                                           # (P, 2, 3)
        self.P = int(pairs.shape[0])

        # self.A = torch.diff(receivers[combinations], dim=-2).squeeze(-2)
        self.A = (pairs[:, 1, :] - pairs[:, 0, :]).astype(np.float32)      # (P, 3)
        # self.b = torch.diff(torch.sum(receivers**2, dim=-1)).squeeze(-1)
        sq = (pairs ** 2).sum(-1)                                          # (P, 2)
        self.b = (sq[:, 1] - sq[:, 0]).astype(np.float32)                  # (P,)
        self.i = combos[:, 0]                                              # (P,)
        self.reference_receiver = rc[0]                                    # (3,)
        self.room_dimensions = np.asarray(room_dimensions, dtype=np.float32)

        if int(self.i.max()) > 3:
            # Original module gathers from F.pad(d[..., :3], (1, 0)) which only
            # has 4 entries; indices > 3 would be out of range there as well.
            raise ValueError("LS gather only supports pair indices i <= 3 "
                             "(<= 5 receivers), matching the PyTorch module.")

        # Constant 3x3 block of the normal matrix of A_full = 2*[A | d]:
        #   K = (2A)^T (2A) = 4 A^T A
        K = 4.0 * self.A.T @ self.A
        # TODO(synk): torch.pinverse is an SVD-based min-norm pseudo-inverse; for
        # rank-deficient A (e.g. coplanar receivers) the full-rank Schur-complement
        # normal-equation solve below is not equivalent.
        self.Kinv = np.linalg.inv(K.astype(np.float64)).astype(np.float32)

        self._build_kernel()

    # --------------------------------------------------------------- kernel
    def _build_kernel(self):
        # TODO(synk): tdoa_to_distance is not defined in the source file; using
        # the standard samples -> meters conversion distance = tdoa * c / fs.
        scale = float(SPEED_OF_SOUND / self.sampling_rate)
        P = self.P
        # Fold the 4x / 2x design-matrix factors into baked coefficients.
        A4 = [[float(4.0 * self.A[p, k]) for k in range(3)] for p in range(P)]
        A2 = [[float(2.0 * self.A[p, k]) for k in range(3)] for p in range(P)]
        BCONST = [float(v) for v in self.b]
        IIDX = [int(v) for v in self.i]
        KINV = [[float(self.Kinv[m, k]) for k in range(3)] for m in range(3)]
        REF = [float(v) for v in self.reference_receiver]
        CENT = [float(v) for v in self.rec_centroid]
        ROOM = [float(v) for v in self.room_dimensions]
        REL = [c if self.relative else 0.0 for c in CENT]
        FMAX = float(np.finfo(np.float32).max)

        def kernel(td_ref, out_ref):
            bt = td_ref.shape[1]          # sublane rows in this block (multiple of SUB)
            n_sub = bt // SUB

            def body(j, carry):
                off = pl.multiple_of(j * SUB, SUB)
                sl = pl.ds(off, SUB)

                # Per-pair distance chunks, each a fully dense (SUB, 128) tile.
                d = [td_ref[p, sl, :] * scale for p in range(P)]
                sq = [dp * dp for dp in d]

                # b[p] - d[p]^2 - 2*d[p]*([0, d0, d1, d2][i[p]])  (gather baked)
                bv = []
                for p in range(P):
                    ip = IIDX[p]
                    if ip == 0:
                        bv.append(BCONST[p] - sq[p])
                    else:
                        bv.append(BCONST[p] - sq[p] - 2.0 * d[p] * d[ip - 1])

                def acc(terms):
                    out = terms[0]
                    for t_ in terms[1:]:
                        out = out + t_
                    return out

                # Normal equations of A_full = 2*[A | d]; the pair axis is fully
                # unrolled on the VPU (no XLU cross-lane reductions):
                #   M = [[K, c], [c^T, s]],  rhs = [r; t]
                c = [acc([d[p] * A4[p][k] for p in range(P)]) for k in range(3)]
                r = [acc([bv[p] * A2[p][k] for p in range(P)]) for k in range(3)]
                s = 4.0 * acc(sq)
                t = 2.0 * acc([d[p] * bv[p] for p in range(P)])

                # Schur-complement solve (K^-1 is a baked compile-time constant).
                kir = [KINV[m][0] * r[0] + KINV[m][1] * r[1] + KINV[m][2] * r[2]
                       for m in range(3)]
                kic = [KINV[m][0] * c[0] + KINV[m][1] * c[1] + KINV[m][2] * c[2]
                       for m in range(3)]
                ct_kir = c[0] * kir[0] + c[1] * kir[1] + c[2] * kir[2]
                ct_kic = c[0] * kic[0] + c[1] * kic[1] + c[2] * kic[2]

                denom = s - ct_kic
                inv = pl.reciprocal(denom, approx=True)     # EUP slot
                inv = inv * (2.0 - denom * inv)             # one Newton step -> ~f32 exact
                x4 = (t - ct_kir) * inv                     # ls[..., 3]
                x3 = [kir[m] - kic[m] * x4 for m in range(3)]  # ls[..., :3]

                # x = sqrt(ls3^2 - ||ls[:3] - reference_receiver||^2)
                arg = (x4 * x4
                       - (x3[0] - REF[0]) ** 2
                       - (x3[1] - REF[1]) ** 2
                       - (x3[2] - REF[2]) ** 2)
                xc = jnp.sqrt(arg)                          # may be NaN

                est = (xc, x3[1], x3[2])
                for k in range(3):
                    e = est[k]
                    e = jnp.where(jnp.isnan(e), 0.0, e)     # nan_to_num: nan -> 0
                    e = jnp.clip(e, -FMAX, FMAX)            # nan_to_num: +-inf -> +-max
                    e = jnp.clip(e + CENT[k], 0.0, ROOM[k]) - REL[k]
                    out_ref[k, sl, :] = e                   # dense (SUB,128) store
                return carry

            lax.fori_loop(0, n_sub, body, 0)

        self._kernel = kernel

    # -------------------------------------------------------------- forward
    def forward(self, tdoas):
        """tdoas: (B, P, 1) float32, like the PyTorch module. Returns (B, 3)."""
        tdoas = jnp.asarray(tdoas, dtype=jnp.float32)
        B = int(tdoas.shape[0])
        P = self.P

        # Pack the batch densely onto sublanes x lanes: (P, NB_pad, 128).
        NB = -(-B // LANES)                               # ceil(B / 128)
        BT = min(MAX_BT, -(-NB // SUB) * SUB)             # sublane rows per grid step
        NB_pad = -(-NB // BT) * BT
        B_pad = NB_pad * LANES

        td = tdoas.reshape(B, P)
        if B_pad != B:
            td = jnp.pad(td, ((0, B_pad - B), (0, 0)))
        td = td.T.reshape(P, NB_pad, LANES)               # batch on sublanes x lanes

        out = pl.pallas_call(
            self._kernel,
            out_shape=jax.ShapeDtypeStruct((3, NB_pad, LANES), jnp.float32),
            grid=(NB_pad // BT,),
            in_specs=[pl.BlockSpec((P, BT, LANES), lambda i: (0, i, 0))],
            out_specs=pl.BlockSpec((3, BT, LANES), lambda i: (0, i, 0)),
            compiler_params=pltpu.CompilerParams(
                dimension_semantics=("parallel",)),        # megacore on v7x
        )(td)

        return out.reshape(3, B_pad).T[:B]                # (B, 3)

    # ----------------------------------------------- pure-JAX reference impl
    def forward_reference(self, tdoas):
        tdoas = jnp.asarray(tdoas, dtype=jnp.float32)
        B = tdoas.shape[0]
        dist = tdoas * (SPEED_OF_SOUND / self.sampling_rate)        # (B, P, 1)
        A = jnp.asarray(self.A)
        A_full = 2.0 * jnp.concatenate(
            [jnp.broadcast_to(A, (B,) + A.shape), dist], axis=-1)   # (B, P, 4)
        d = dist[..., 0]                                            # (B, P)
        padded = jnp.pad(d[:, :3], ((0, 0), (1, 0)))
        bvec = jnp.asarray(self.b) - d ** 2 - 2.0 * d * padded[:, self.i]
        ls = jnp.einsum('bij,bj->bi', jnp.linalg.pinv(A_full), bvec)  # (B, 4)
        x = jnp.sqrt(ls[:, 3] ** 2 -
                     jnp.sum((ls[:, :3] - jnp.asarray(self.reference_receiver)) ** 2,
                             axis=-1))
        est = jnp.concatenate([x[:, None], ls[:, 1:3]], axis=-1)
        est = jnp.nan_to_num(est)
        cent = jnp.asarray(self.rec_centroid)
        room = jnp.asarray(self.room_dimensions)
        clamped = jnp.clip(est + cent, 0.0, room)
        return clamped - (cent if self.relative else 0.0)


if __name__ == "__main__":
    sampling_rate = 16000
    room_dimensions = (6.0, 5.0, 3.0)
    # 4 non-coplanar receivers -> P = C(4,2) = 6 microphone pairs
    receivers = np.array([[2.0, 2.0, 1.2],
                          [4.0, 2.2, 1.3],
                          [3.1, 3.6, 1.1],
                          [2.9, 2.6, 2.5]], dtype=np.float32)

    model = LSPallas(sampling_rate=sampling_rate, relative=True)
    model.init(receivers, room_dimensions)

    B, P = 2, model.P                                   # (2, 6)
    key = jax.random.PRNGKey(0)
    tdoas = jax.random.uniform(key, (B, P, 1), dtype=jnp.float32,
                               minval=-60.0, maxval=60.0)

    out = model.forward(tdoas)
    out = jax.block_until_ready(out)

    ref = jax.block_until_ready(model.forward_reference(tdoas))
    assert out.shape == (B, 3)
    np.testing.assert_allclose(np.asarray(out), np.asarray(ref),
                               rtol=5e-2, atol=5e-2)
    print("KERNEL_OK")
</pallas_src>

<mosaic_0001>
module attributes {stable_mosaic.version = 11 : i64} {
  func.func @kernel(%arg0: i32, %arg1: memref<6x8x128xf32, #tpu.memory_space<vmem>>, %arg2: memref<3x8x128xf32, #tpu.memory_space<vmem>>) attributes {dimension_semantics = [#tpu.dimension_semantics<parallel>], iteration_bounds = array<i64: 1>, scalar_prefetch = 0 : i64, scratch_operands = 0 : i64, tpu.core_type = #tpu.core_type<tc>, window_params = [{transform_indices = @transform_0, window_bounds = array<i64: 6, 8, 128>}, {transform_indices = @transform_1, window_bounds = array<i64: 3, 8, 128>}]} {
    %c0_i32 = arith.constant 0 : i32
    %c8_i32 = arith.constant 8 : i32
    %0 = arith.muli %c0_i32, %c8_i32 : i32
    %1 = tpu.assume_multiple %0, 8 : i32
    %c0 = arith.constant 0 : index
    %2 = arith.index_cast %1 : i32 to index
    %c0_0 = arith.constant 0 : index
    %3 = vector.load %arg1[%c0, %2, %c0_0] : memref<6x8x128xf32, #tpu.memory_space<vmem>>, vector<1x8x128xf32>
    %4 = vector.shape_cast %3 : vector<1x8x128xf32> to vector<8x128xf32>
    %cst = arith.constant 2.143750e-02 : f32
    %5 = vector.broadcast %cst : f32 to vector<8x128xf32>
    %6 = arith.mulf %4, %5 : vector<8x128xf32>
    %c1 = arith.constant 1 : index
    %7 = arith.index_cast %1 : i32 to index
    %c0_1 = arith.constant 0 : index
    %8 = vector.load %arg1[%c1, %7, %c0_1] : memref<6x8x128xf32, #tpu.memory_space<vmem>>, vector<1x8x128xf32>
    %9 = vector.shape_cast %8 : vector<1x8x128xf32> to vector<8x128xf32>
    %cst_2 = arith.constant 2.143750e-02 : f32
    %10 = vector.broadcast %cst_2 : f32 to vector<8x128xf32>
    %11 = arith.mulf %9, %10 : vector<8x128xf32>
    %c2 = arith.constant 2 : index
    %12 = arith.index_cast %1 : i32 to index
    %c0_3 = arith.constant 0 : index
    %13 = vector.load %arg1[%c2, %12, %c0_3] : memref<6x8x128xf32, #tpu.memory_space<vmem>>, vector<1x8x128xf32>
    %14 = vector.shape_cast %13 : vector<1x8x128xf32> to vector<8x128xf32>
    %cst_4 = arith.constant 2.143750e-02 : f32
    %15 = vector.broadcast %cst_4 : f32 to vector<8x128xf32>
    %16 = arith.mulf %14, %15 : vector<8x128xf32>
    %c3 = arith.constant 3 : index
    %17 = arith.index_cast %1 : i32 to index
    %c0_5 = arith.constant 0 : index
    %18 = vector.load %arg1[%c3, %17, %c0_5] : memref<6x8x128xf32, #tpu.memory_space<vmem>>, vector<1x8x128xf32>
    %19 = vector.shape_cast %18 : vector<1x8x128xf32> to vector<8x128xf32>
    %cst_6 = arith.constant 2.143750e-02 : f32
    %20 = vector.broadcast %cst_6 : f32 to vector<8x128xf32>
    %21 = arith.mulf %19, %20 : vector<8x128xf32>
    %c4 = arith.constant 4 : index
    %22 = arith.index_cast %1 : i32 to index
    %c0_7 = arith.constant 0 : index
    %23 = vector.load %arg1[%c4, %22, %c0_7] : memref<6x8x128xf32, #tpu.memory_space<vmem>>, vector<1x8x128xf32>
    %24 = vector.shape_cast %23 : vector<1x8x128xf32> to vector<8x128xf32>
    %cst_8 = arith.constant 2.143750e-02 : f32
    %25 = vector.broadcast %cst_8 : f32 to vector<8x128xf32>
    %26 = arith.mulf %24, %25 : vector<8x128xf32>
    %c5 = arith.constant 5 : index
    %27 = arith.index_cast %1 : i32 to index
    %c0_9 = arith.constant 0 : index
    %28 = vector.load %arg1[%c5, %27, %c0_9] : memref<6x8x128xf32, #tpu.memory_space<vmem>>, vector<1x8x128xf32>
    %29 = vector.shape_cast %28 : vector<1x8x128xf32> to vector<8x128xf32>
    %cst_10 = arith.constant 2.143750e-02 : f32
    %30 = vector.broadcast %cst_10 : f32 to vector<8x128xf32>
    %31 = arith.mulf %29, %30 : vector<8x128xf32>
    %32 = arith.mulf %6, %6 : vector<8x128xf32>
    %33 = arith.mulf %11, %11 : vector<8x128xf32>
    %34 = arith.mulf %16, %16 : vector<8x128xf32>
    %35 = arith.mulf %21, %21 : vector<8x128xf32>
    %36 = arith.mulf %26, %26 : vector<8x128xf32>
    %37 = arith.mulf %31, %31 : vector<8x128xf32>
    %cst_11 = arith.constant -2.550000e-01 : f32
    %38 = vector.broadcast %cst_11 : f32 to vector<8x128xf32>
    %39 = arith.subf %38, %32 : vector<8x128xf32>
    %cst_12 = arith.constant -0.274999857 : f32
    %40 = vector.broadcast %cst_12 : f32 to vector<8x128xf32>
    %41 = arith.subf %40, %33 : vector<8x128xf32>
    %cst_13 = arith.constant -0.504999757 : f32
    %42 = vector.broadcast %cst_13 : f32 to vector<8x128xf32>
    %43 = arith.subf %42, %34 : vector<8x128xf32>
    %cst_14 = arith.constant -0.0199998617 : f32
    %44 = vector.broadcast %cst_14 : f32 to vector<8x128xf32>
    %45 = arith.subf %44, %35 : vector<8x128xf32>
    %cst_15 = arith.constant 2.000000e+00 : f32
    %46 = vector.broadcast %cst_15 : f32 to vector<8x128xf32>
    %47 = arith.mulf %46, %21 : vector<8x128xf32>
    %48 = arith.mulf %47, %6 : vector<8x128xf32>
    %49 = arith.subf %45, %48 : vector<8x128xf32>
    %cst_16 = arith.constant -0.249999762 : f32
    %50 = vector.broadcast %cst_16 : f32 to vector<8x128xf32>
    %51 = arith.subf %50, %36 : vector<8x128xf32>
    %cst_17 = arith.constant 2.000000e+00 : f32
    %52 = vector.broadcast %cst_17 : f32 to vector<8x128xf32>
    %53 = arith.mulf %52, %26 : vector<8x128xf32>
    %54 = arith.mulf %53, %6 : vector<8x128xf32>
    %55 = arith.subf %51, %54 : vector<8x128xf32>
    %cst_18 = arith.constant -0.2299999 : f32
    %56 = vector.broadcast %cst_18 : f32 to vector<8x128xf32>
    %57 = arith.subf %56, %37 : vector<8x128xf32>
    %cst_19 = arith.constant 2.000000e+00 : f32
    %58 = vector.broadcast %cst_19 : f32 to vector<8x128xf32>
    %59 = arith.mulf %58, %31 : vector<8x128xf32>
    %60 = arith.mulf %59, %11 : vector<8x128xf32>
    %61 = arith.subf %57, %60 : vector<8x128xf32>
    %cst_20 = arith.constant 8.000000e+00 : f32
    %62 = vector.broadcast %cst_20 : f32 to vector<8x128xf32>
    %63 = arith.mulf %6, %62 : vector<8x128xf32>
    %cst_21 = arith.constant 4.39999962 : f32
    %64 = vector.broadcast %cst_21 : f32 to vector<8x128xf32>
    %65 = arith.mulf %11, %64 : vector<8x128xf32>
    %cst_22 = arith.constant 3.60000038 : f32
    %66 = vector.broadcast %cst_22 : f32 to vector<8x128xf32>
    %67 = arith.mulf %16, %66 : vector<8x128xf32>
    %cst_23 = arith.constant -3.60000038 : f32
    %68 = vector.broadcast %cst_23 : f32 to vector<8x128xf32>
    %69 = arith.mulf %21, %68 : vector<8x128xf32>
    %cst_24 = arith.constant -4.39999962 : f32
    %70 = vector.broadcast %cst_24 : f32 to vector<8x128xf32>
    %71 = arith.mulf %26, %70 : vector<8x128xf32>
    %cst_25 = arith.constant -0.799999237 : f32
    %72 = vector.broadcast %cst_25 : f32 to vector<8x128xf32>
    %73 = arith.mulf %31, %72 : vector<8x128xf32>
    %74 = arith.addf %63, %65 : vector<8x128xf32>
    %75 = arith.addf %74, %67 : vector<8x128xf32>
    %76 = arith.addf %75, %69 : vector<8x128xf32>
    %77 = arith.addf %76, %71 : vector<8x128xf32>
    %78 = arith.addf %77, %73 : vector<8x128xf32>
    %cst_26 = arith.constant 0.80000019 : f32
    %79 = vector.broadcast %cst_26 : f32 to vector<8x128xf32>
    %80 = arith.mulf %6, %79 : vector<8x128xf32>
    %cst_27 = arith.constant 6.39999962 : f32
    %81 = vector.broadcast %cst_27 : f32 to vector<8x128xf32>
    %82 = arith.mulf %11, %81 : vector<8x128xf32>
    %cst_28 = arith.constant 2.39999962 : f32
    %83 = vector.broadcast %cst_28 : f32 to vector<8x128xf32>
    %84 = arith.mulf %16, %83 : vector<8x128xf32>
    %cst_29 = arith.constant 5.59999943 : f32
    %85 = vector.broadcast %cst_29 : f32 to vector<8x128xf32>
    %86 = arith.mulf %21, %85 : vector<8x128xf32>
    %cst_30 = arith.constant 1.59999943 : f32
    %87 = vector.broadcast %cst_30 : f32 to vector<8x128xf32>
    %88 = arith.mulf %26, %87 : vector<8x128xf32>
    %cst_31 = arith.constant -4.000000e+00 : f32
    %89 = vector.broadcast %cst_31 : f32 to vector<8x128xf32>
    %90 = arith.mulf %31, %89 : vector<8x128xf32>
    %91 = arith.addf %80, %82 : vector<8x128xf32>
    %92 = arith.addf %91, %84 : vector<8x128xf32>
    %93 = arith.addf %92, %86 : vector<8x128xf32>
    %94 = arith.addf %93, %88 : vector<8x128xf32>
    %95 = arith.addf %94, %90 : vector<8x128xf32>
    %cst_32 = arith.constant 0.399999619 : f32
    %96 = vector.broadcast %cst_32 : f32 to vector<8x128xf32>
    %97 = arith.mulf %6, %96 : vector<8x128xf32>
    %cst_33 = arith.constant -0.400000095 : f32
    %98 = vector.broadcast %cst_33 : f32 to vector<8x128xf32>
    %99 = arith.mulf %11, %98 : vector<8x128xf32>
    %cst_34 = arith.constant 5.200000e+00 : f32
    %100 = vector.broadcast %cst_34 : f32 to vector<8x128xf32>
    %101 = arith.mulf %16, %100 : vector<8x128xf32>
    %cst_35 = arith.constant -0.799999713 : f32
    %102 = vector.broadcast %cst_35 : f32 to vector<8x128xf32>
    %103 = arith.mulf %21, %102 : vector<8x128xf32>
    %cst_36 = arith.constant 4.800000e+00 : f32
    %104 = vector.broadcast %cst_36 : f32 to vector<8x128xf32>
    %105 = arith.mulf %26, %104 : vector<8x128xf32>
    %cst_37 = arith.constant 5.600000e+00 : f32
    %106 = vector.broadcast %cst_37 : f32 to vector<8x128xf32>
    %107 = arith.mulf %31, %106 : vector<8x128xf32>
    %108 = arith.addf %97, %99 : vector<8x128xf32>
    %109 = arith.addf %108, %101 : vector<8x128xf32>
    %110 = arith.addf %109, %103 : vector<8x128xf32>
    %111 = arith.addf %110, %105 : vector<8x128xf32>
    %112 = arith.addf %111, %107 : vector<8x128xf32>
    %cst_38 = arith.constant 4.000000e+00 : f32
    %113 = vector.broadcast %cst_38 : f32 to vector<8x128xf32>
    %114 = arith.mulf %39, %113 : vector<8x128xf32>
    %cst_39 = arith.constant 2.19999981 : f32
    %115 = vector.broadcast %cst_39 : f32 to vector<8x128xf32>
    %116 = arith.mulf %41, %115 : vector<8x128xf32>
    %cst_40 = arith.constant 1.80000019 : f32
    %117 = vector.broadcast %cst_40 : f32 to vector<8x128xf32>
    %118 = arith.mulf %43, %117 : vector<8x128xf32>
    %cst_41 = arith.constant -1.80000019 : f32
    %119 = vector.broadcast %cst_41 : f32 to vector<8x128xf32>
    %120 = arith.mulf %49, %119 : vector<8x128xf32>
    %cst_42 = arith.constant -2.19999981 : f32
    %121 = vector.broadcast %cst_42 : f32 to vector<8x128xf32>
    %122 = arith.mulf %55, %121 : vector<8x128xf32>
    %cst_43 = arith.constant -0.399999619 : f32
    %123 = vector.broadcast %cst_43 : f32 to vector<8x128xf32>
    %124 = arith.mulf %61, %123 : vector<8x128xf32>
    %125 = arith.addf %114, %116 : vector<8x128xf32>
    %126 = arith.addf %125, %118 : vector<8x128xf32>
    %127 = arith.addf %126, %120 : vector<8x128xf32>
    %128 = arith.addf %127, %122 : vector<8x128xf32>
    %129 = arith.addf %128, %124 : vector<8x128xf32>
    %cst_44 = arith.constant 0.400000095 : f32
    %130 = vector.broadcast %cst_44 : f32 to vector<8x128xf32>
    %131 = arith.mulf %39, %130 : vector<8x128xf32>
    %cst_45 = arith.constant 3.19999981 : f32
    %132 = vector.broadcast %cst_45 : f32 to vector<8x128xf32>
    %133 = arith.mulf %41, %132 : vector<8x128xf32>
    %cst_46 = arith.constant 1.19999981 : f32
    %134 = vector.broadcast %cst_46 : f32 to vector<8x128xf32>
    %135 = arith.mulf %43, %134 : vector<8x128xf32>
    %cst_47 = arith.constant 2.79999971 : f32
    %136 = vector.broadcast %cst_47 : f32 to vector<8x128xf32>
    %137 = arith.mulf %49, %136 : vector<8x128xf32>
    %cst_48 = arith.constant 0.799999713 : f32
    %138 = vector.broadcast %cst_48 : f32 to vector<8x128xf32>
    %139 = arith.mulf %55, %138 : vector<8x128xf32>
    %cst_49 = arith.constant -2.000000e+00 : f32
    %140 = vector.broadcast %cst_49 : f32 to vector<8x128xf32>
    %141 = arith.mulf %61, %140 : vector<8x128xf32>
    %142 = arith.addf %131, %133 : vector<8x128xf32>
    %143 = arith.addf %142, %135 : vector<8x128xf32>
    %144 = arith.addf %143, %137 : vector<8x128xf32>
    %145 = arith.addf %144, %139 : vector<8x128xf32>
    %146 = arith.addf %145, %141 : vector<8x128xf32>
    %cst_50 = arith.constant 0.199999809 : f32
    %147 = vector.broadcast %cst_50 : f32 to vector<8x128xf32>
    %148 = arith.mulf %39, %147 : vector<8x128xf32>
    %cst_51 = arith.constant -0.200000048 : f32
    %149 = vector.broadcast %cst_51 : f32 to vector<8x128xf32>
    %150 = arith.mulf %41, %149 : vector<8x128xf32>
    %cst_52 = arith.constant 2.600000e+00 : f32
    %151 = vector.broadcast %cst_52 : f32 to vector<8x128xf32>
    %152 = arith.mulf %43, %151 : vector<8x128xf32>
    %cst_53 = arith.constant -0.399999857 : f32
    %153 = vector.broadcast %cst_53 : f32 to vector<8x128xf32>
    %154 = arith.mulf %49, %153 : vector<8x128xf32>
    %cst_54 = arith.constant 2.400000e+00 : f32
    %155 = vector.broadcast %cst_54 : f32 to vector<8x128xf32>
    %156 = arith.mulf %55, %155 : vector<8x128xf32>
    %cst_55 = arith.constant 2.800000e+00 : f32
    %157 = vector.broadcast %cst_55 : f32 to vector<8x128xf32>
    %158 = arith.mulf %61, %157 : vector<8x128xf32>
    %159 = arith.addf %148, %150 : vector<8x128xf32>
    %160 = arith.addf %159, %152 : vector<8x128xf32>
    %161 = arith.addf %160, %154 : vector<8x128xf32>
    %162 = arith.addf %161, %156 : vector<8x128xf32>
    %163 = arith.addf %162, %158 : vector<8x128xf32>
    %164 = arith.addf %32, %33 : vector<8x128xf32>
    %165 = arith.addf %164, %34 : vector<8x128xf32>
    %166 = arith.addf %165, %35 : vector<8x128xf32>
    %167 = arith.addf %166, %36 : vector<8x128xf32>
    %168 = arith.addf %167, %37 : vector<8x128xf32>
    %cst_56 = arith.constant 4.000000e+00 : f32
    %169 = vector.broadcast %cst_56 : f32 to vector<8x128xf32>
    %170 = arith.mulf %169, %168 : vector<8x128xf32>
    %171 = arith.mulf %6, %39 : vector<8x128xf32>
    %172 = arith.mulf %11, %41 : vector<8x128xf32>
    %173 = arith.mulf %16, %43 : vector<8x128xf32>
    %174 = arith.mulf %21, %49 : vector<8x128xf32>
    %175 = arith.mulf %26, %55 : vector<8x128xf32>
    %176 = arith.mulf %31, %61 : vector<8x128xf32>
    %177 = arith.addf %171, %172 : vector<8x128xf32>
    %178 = arith.addf %177, %173 : vector<8x128xf32>
    %179 = arith.addf %178, %174 : vector<8x128xf32>
    %180 = arith.addf %179, %175 : vector<8x128xf32>
    %181 = arith.addf %180, %176 : vector<8x128xf32>
    %cst_57 = arith.constant 2.000000e+00 : f32
    %182 = vector.broadcast %cst_57 : f32 to vector<8x128xf32>
    %183 = arith.mulf %182, %181 : vector<8x128xf32>
    %cst_58 = arith.constant 0.0318768695 : f32
    %184 = vector.broadcast %cst_58 : f32 to vector<8x128xf32>
    %185 = arith.mulf %184, %129 : vector<8x128xf32>
    %cst_59 = arith.constant -0.00626299763 : f32
    %186 = vector.broadcast %cst_59 : f32 to vector<8x128xf32>
    %187 = arith.mulf %186, %146 : vector<8x128xf32>
    %188 = arith.addf %185, %187 : vector<8x128xf32>
    %cst_60 = arith.constant 3.09323252E-4 : f32
    %189 = vector.broadcast %cst_60 : f32 to vector<8x128xf32>
    %190 = arith.mulf %189, %163 : vector<8x128xf32>
    %191 = arith.addf %188, %190 : vector<8x128xf32>
    %cst_61 = arith.constant -0.00626299763 : f32
    %192 = vector.broadcast %cst_61 : f32 to vector<8x128xf32>
    %193 = arith.mulf %192, %129 : vector<8x128xf32>
    %cst_62 = arith.constant 0.0427649282 : f32
    %194 = vector.broadcast %cst_62 : f32 to vector<8x128xf32>
    %195 = arith.mulf %194, %146 : vector<8x128xf32>
    %196 = arith.addf %193, %195 : vector<8x128xf32>
    %cst_63 = arith.constant 4.455590e-03 : f32
    %197 = vector.broadcast %cst_63 : f32 to vector<8x128xf32>
    %198 = arith.mulf %197, %163 : vector<8x128xf32>
    %199 = arith.addf %196, %198 : vector<8x128xf32>
    %cst_64 = arith.constant 3.09323252E-4 : f32
    %200 = vector.broadcast %cst_64 : f32 to vector<8x128xf32>
    %201 = arith.mulf %200, %129 : vector<8x128xf32>
    %cst_65 = arith.constant 4.455590e-03 : f32
    %202 = vector.broadcast %cst_65 : f32 to vector<8x128xf32>
    %203 = arith.mulf %202, %146 : vector<8x128xf32>
    %204 = arith.addf %201, %203 : vector<8x128xf32>
    %cst_66 = arith.constant 0.0490377918 : f32
    %205 = vector.broadcast %cst_66 : f32 to vector<8x128xf32>
    %206 = arith.mulf %205, %163 : vector<8x128xf32>
    %207 = arith.addf %204, %206 : vector<8x128xf32>
    %cst_67 = arith.constant 0.0318768695 : f32
    %208 = vector.broadcast %cst_67 : f32 to vector<8x128xf32>
    %209 = arith.mulf %208, %78 : vector<8x128xf32>
    %cst_68 = arith.constant -0.00626299763 : f32
    %210 = vector.broadcast %cst_68 : f32 to vector<8x128xf32>
    %211 = arith.mulf %210, %95 : vector<8x128xf32>
    %212 = arith.addf %209, %211 : vector<8x128xf32>
    %cst_69 = arith.constant 3.09323252E-4 : f32
    %213 = vector.broadcast %cst_69 : f32 to vector<8x128xf32>
    %214 = arith.mulf %213, %112 : vector<8x128xf32>
    %215 = arith.addf %212, %214 : vector<8x128xf32>
    %cst_70 = arith.constant -0.00626299763 : f32
    %216 = vector.broadcast %cst_70 : f32 to vector<8x128xf32>
    %217 = arith.mulf %216, %78 : vector<8x128xf32>
    %cst_71 = arith.constant 0.0427649282 : f32
    %218 = vector.broadcast %cst_71 : f32 to vector<8x128xf32>
    %219 = arith.mulf %218, %95 : vector<8x128xf32>
    %220 = arith.addf %217, %219 : vector<8x128xf32>
    %cst_72 = arith.constant 4.455590e-03 : f32
    %221 = vector.broadcast %cst_72 : f32 to vector<8x128xf32>
    %222 = arith.mulf %221, %112 : vector<8x128xf32>
    %223 = arith.addf %220, %222 : vector<8x128xf32>
    %cst_73 = arith.constant 3.09323252E-4 : f32
    %224 = vector.broadcast %cst_73 : f32 to vector<8x128xf32>
    %225 = arith.mulf %224, %78 : vector<8x128xf32>
    %cst_74 = arith.constant 4.455590e-03 : f32
    %226 = vector.broadcast %cst_74 : f32 to vector<8x128xf32>
    %227 = arith.mulf %226, %95 : vector<8x128xf32>
    %228 = arith.addf %225, %227 : vector<8x128xf32>
    %cst_75 = arith.constant 0.0490377918 : f32
    %229 = vector.broadcast %cst_75 : f32 to vector<8x128xf32>
    %230 = arith.mulf %229, %112 : vector<8x128xf32>
    %231 = arith.addf %228, %230 : vector<8x128xf32>
    %232 = arith.mulf %78, %191 : vector<8x128xf32>
    %233 = arith.mulf %95, %199 : vector<8x128xf32>
    %234 = arith.addf %232, %233 : vector<8x128xf32>
    %235 = arith.mulf %112, %207 : vector<8x128xf32>
    %236 = arith.addf %234, %235 : vector<8x128xf32>
    %237 = arith.mulf %78, %215 : vector<8x128xf32>
    %238 = arith.mulf %95, %223 : vector<8x128xf32>
    %239 = arith.addf %237, %238 : vector<8x128xf32>
    %240 = arith.mulf %112, %231 : vector<8x128xf32>
    %241 = arith.addf %239, %240 : vector<8x128xf32>
    %242 = arith.subf %170, %241 : vector<8x128xf32>
    %243 = tpu.reciprocal %242 {approx = true} : vector<8x128xf32> -> vector<8x128xf32>
    %244 = arith.mulf %242, %243 : vector<8x128xf32>
    %cst_76 = arith.constant 2.000000e+00 : f32
    %245 = vector.broadcast %cst_76 : f32 to vector<8x128xf32>
    %246 = arith.subf %245, %244 : vector<8x128xf32>
    %247 = arith.mulf %243, %246 : vector<8x128xf32>
    %248 = arith.subf %183, %236 : vector<8x128xf32>
    %249 = arith.mulf %248, %247 : vector<8x128xf32>
    %250 = arith.mulf %215, %249 : vector<8x128xf32>
    %251 = arith.subf %191, %250 : vector<8x128xf32>
    %252 = arith.mulf %223, %249 : vector<8x128xf32>
    %253 = arith.subf %199, %252 : vector<8x128xf32>
    %254 = arith.mulf %231, %249 : vector<8x128xf32>
    %255 = arith.subf %207, %254 : vector<8x128xf32>
    %256 = arith.mulf %249, %249 : vector<8x128xf32>
    %cst_77 = arith.constant -1.000000e+00 : f32
    %257 = vector.broadcast %cst_77 : f32 to vector<8x128xf32>
    %258 = arith.subf %251, %257 : vector<8x128xf32>
    %259 = arith.mulf %258, %258 : vector<8x128xf32>
    %260 = arith.subf %256, %259 : vector<8x128xf32>
    %cst_78 = arith.constant -0.599999904 : f32
    %261 = vector.broadcast %cst_78 : f32 to vector<8x128xf32>
    %262 = arith.subf %253, %261 : vector<8x128xf32>
    %263 = arith.mulf %262, %262 : vector<8x128xf32>
    %264 = arith.subf %260, %263 : vector<8x128xf32>
    %cst_79 = arith.constant -0.324999928 : f32
    %265 = vector.broadcast %cst_79 : f32 to vector<8x128xf32>
    %266 = arith.subf %255, %265 : vector<8x128xf32>
    %267 = arith.mulf %266, %266 : vector<8x128xf32>
    %268 = arith.subf %264, %267 : vector<8x128xf32>
    %269 = math.sqrt %268 : vector<8x128xf32>
    %270 = arith.cmpf one, %269, %269 : vector<8x128xf32>
    %cst_80 = arith.constant 0.000000e+00 : f32
    %271 = vector.broadcast %cst_80 : f32 to vector<8x128xf32>
    %272 = arith.select %270, %271, %269 : vector<8x128xi1>, vector<8x128xf32>
    %cst_81 = arith.constant -3.40282347E+38 : f32
    %cst_82 = arith.constant 3.40282347E+38 : f32
    %273 = vector.broadcast %cst_81 : f32 to vector<8x128xf32>
    %274 = arith.maximumf %273, %272 : vector<8x128xf32>
    %275 = vector.broadcast %cst_82 : f32 to vector<8x128xf32>
    %276 = arith.minimumf %275, %274 : vector<8x128xf32>
    %cst_83 = arith.constant 3.000000e+00 : f32
    %277 = vector.broadcast %cst_83 : f32 to vector<8x128xf32>
    %278 = arith.addf %276, %277 : vector<8x128xf32>
    %cst_84 = arith.constant 0.000000e+00 : f32
    %cst_85 = arith.constant 6.000000e+00 : f32
    %279 = vector.broadcast %cst_84 : f32 to vector<8x128xf32>
    %280 = arith.maximumf %279, %278 : vector<8x128xf32>
    %281 = vector.broadcast %cst_85 : f32 to vector<8x128xf32>
    %282 = arith.minimumf %281, %280 : vector<8x128xf32>
    %cst_86 = arith.constant 3.000000e+00 : f32
    %283 = vector.broadcast %cst_86 : f32 to vector<8x128xf32>
    %284 = arith.subf %282, %283 : vector<8x128xf32>
    %c0_87 = arith.constant 0 : index
    %285 = arith.index_cast %1 : i32 to index
    %c0_88 = arith.constant 0 : index
    %286 = vector.load %arg2[%c0_87, %285, %c0_88] : memref<3x8x128xf32, #tpu.memory_space<vmem>>, vector<1x8x128xf32>
    %287 = vector.shape_cast %286 : vector<1x8x128xf32> to vector<8x128xf32>
    %288 = vector.shape_cast %284 : vector<8x128xf32> to vector<1x8x128xf32>
    tpu.vector_store %arg2[%c0_87, %285, %c0_88], %288 {strides = array<i32>} : memref<3x8x128xf32, #tpu.memory_space<vmem>>, vector<1x8x128xf32>,
    %289 = arith.cmpf one, %253, %253 : vector<8x128xf32>
    %cst_89 = arith.constant 0.000000e+00 : f32
    %290 = vector.broadcast %cst_89 : f32 to vector<8x128xf32>
    %291 = arith.select %289, %290, %253 : vector<8x128xi1>, vector<8x128xf32>
    %cst_90 = arith.constant -3.40282347E+38 : f32
    %cst_91 = arith.constant 3.40282347E+38 : f32
    %292 = vector.broadcast %cst_90 : f32 to vector<8x128xf32>
    %293 = arith.maximumf %292, %291 : vector<8x128xf32>
    %294 = vector.broadcast %cst_91 : f32 to vector<8x128xf32>
    %295 = arith.minimumf %294, %293 : vector<8x128xf32>
    %cst_92 = arith.constant 2.600000e+00 : f32
    %296 = vector.broadcast %cst_92 : f32 to vector<8x128xf32>
    %297 = arith.addf %295, %296 : vector<8x128xf32>
    %cst_93 = arith.constant 0.000000e+00 : f32
    %cst_94 = arith.constant 5.000000e+00 : f32
    %298 = vector.broadcast %cst_93 : f32 to vector<8x128xf32>
    %299 = arith.maximumf %298, %297 : vector<8x128xf32>
    %300 = vector.broadcast %cst_94 : f32 to vector<8x128xf32>
    %301 = arith.minimumf %300, %299 : vector<8x128xf32>
    %cst_95 = arith.constant 2.600000e+00 : f32
    %302 = vector.broadcast %cst_95 : f32 to vector<8x128xf32>
    %303 = arith.subf %301, %302 : vector<8x128xf32>
    %c1_96 = arith.constant 1 : index
    %304 = arith.index_cast %1 : i32 to index
    %c0_97 = arith.constant 0 : index
    %305 = vector.load %arg2[%c1_96, %304, %c0_97] : memref<3x8x128xf32, #tpu.memory_space<vmem>>, vector<1x8x128xf32>
    %306 = vector.shape_cast %305 : vector<1x8x128xf32> to vector<8x128xf32>
    %307 = vector.shape_cast %303 : vector<8x128xf32> to vector<1x8x128xf32>
    tpu.vector_store %arg2[%c1_96, %304, %c0_97], %307 {strides = array<i32>} : memref<3x8x128xf32, #tpu.memory_space<vmem>>, vector<1x8x128xf32>,
    %308 = arith.cmpf one, %255, %255 : vector<8x128xf32>
    %cst_98 = arith.constant 0.000000e+00 : f32
    %309 = vector.broadcast %cst_98 : f32 to vector<8x128xf32>
    %310 = arith.select %308, %309, %255 : vector<8x128xi1>, vector<8x128xf32>
    %cst_99 = arith.constant -3.40282347E+38 : f32
    %cst_100 = arith.constant 3.40282347E+38 : f32
    %311 = vector.broadcast %cst_99 : f32 to vector<8x128xf32>
    %312 = arith.maximumf %311, %310 : vector<8x128xf32>
    %313 = vector.broadcast %cst_100 : f32 to vector<8x128xf32>
    %314 = arith.minimumf %313, %312 : vector<8x128xf32>
    %cst_101 = arith.constant 1.525000e+00 : f32
    %315 = vector.broadcast %cst_101 : f32 to vector<8x128xf32>
    %316 = arith.addf %314, %315 : vector<8x128xf32>
    %cst_102 = arith.constant 0.000000e+00 : f32
    %cst_103 = arith.constant 3.000000e+00 : f32
    %317 = vector.broadcast %cst_102 : f32 to vector<8x128xf32>
    %318 = arith.maximumf %317, %316 : vector<8x128xf32>
    %319 = vector.broadcast %cst_103 : f32 to vector<8x128xf32>
    %320 = arith.minimumf %319, %318 : vector<8x128xf32>
    %cst_104 = arith.constant 1.525000e+00 : f32
    %321 = vector.broadcast %cst_104 : f32 to vector<8x128xf32>
    %322 = arith.subf %320, %321 : vector<8x128xf32>
    %c2_105 = arith.constant 2 : index
    %323 = arith.index_cast %1 : i32 to index
    %c0_106 = arith.constant 0 : index
    %324 = vector.load %arg2[%c2_105, %323, %c0_106] : memref<3x8x128xf32, #tpu.memory_space<vmem>>, vector<1x8x128xf32>
    %325 = vector.shape_cast %324 : vector<1x8x128xf32> to vector<8x128xf32>
    %326 = vector.shape_cast %322 : vector<8x128xf32> to vector<1x8x128xf32>
    tpu.vector_store %arg2[%c2_105, %323, %c0_106], %326 {strides = array<i32>} : memref<3x8x128xf32, #tpu.memory_space<vmem>>, vector<1x8x128xf32>,
    %c1_i32 = arith.constant 1 : i32
    return
  }
  func.func @transform_0(%arg0: i32) -> (i32, i32, i32) {
    %c0_i32 = arith.constant 0 : i32
    %c0_i32_0 = arith.constant 0 : i32
    %c0_i32_1 = arith.constant 0 : i32
    return %c0_i32, %arg0, %c0_i32_0 : i32, i32, i32
  }
  func.func @transform_1(%arg0: i32) -> (i32, i32, i32) {
    %c0_i32 = arith.constant 0 : i32
    %c0_i32_0 = arith.constant 0 : i32
    %c0_i32_1 = arith.constant 0 : i32
    return %c0_i32, %arg0, %c0_i32_0 : i32, i32, i32
  }
}

</mosaic_0001>

<llo_original>
// kernel: tpu_custom_call.1
$region0: #{tpu_custom_call.1}
  #allocation0 [shape = 'u32[]', space=smem, size = 0x4, offset = 0x4, fixed_abs, tag = 'smem constant byte address 0x4 - core index']
  #allocation1 [shape = 'u32[72,128]{1,0:T(1,128)}', space=vmem, size = 0x9000, scoped, tag = 'internal scratch']
  %s0 = inlined_call_operand.hbm [shape: f32[6,8,128], index: 0, kind: input, shape index: {}]
  %s1 = inlined_call_operand.hbm [shape: f32[3,8,128], index: 1, kind: output, shape index: {}]
  %s2 = sld [smem:[#allocation0]]
  $region18: #{tpu_custom_call.1} parent=0
    _
  %s4 = ssub.s32 1, %s2
  %s5 = scalar_select 0, %s4, %s2
  $region1: #{tpu_custom_call.1} parent=0
    #allocation2 [shape = 'u8[24576]{0}', space=vmem, size = 0x6000, scoped, tag = 'input window, operand 0, single buffered']
    #allocation3 [shape = 's32[1]{0}', space=sflag, size = 0x4, scoped, tag = 'scoped memory for tpu_custom_call.1']
    #allocation4 [shape = 's32[1]{0}', space=sflag, size = 0x4, scoped, tag = 'scoped memory for tpu_custom_call.1']
    #allocation5 [shape = 'u8[12288]{0}', space=vmem, size = 0x3000, scoped, tag = 'output window, operand 0, single buffered']
    %6 = vsyncpa [#allocation3], 0
    %7 = vsyncpa [#allocation4], 0
    // Predicated region
    $region2: #{tpu_custom_call.1} parent=1 // pred_check
      _
    $region3: #{tpu_custom_call.1} parent=1 // pred_check_branch
      %9 = sbr.rel (0) target = $region5
    $region4: #{tpu_custom_call.1} parent=1 // pred_region
      %11 = vsyncadd [#allocation3], 0
      %s12 = sshll.u32 %s0, 4
      %s13 = int_to_ptr.hbm [resolvable:$true] %s12
      %s14 = sshll.u32 [#allocation2], 4
      %s15 = int_to_ptr.vmem [resolvable:$true] %s14
      %20 = dma.hbm_to_vmem [thread:$0]  %s13, 768, %s15, [#allocation3], 128, 128, 8
    $region5: #{tpu_custom_call.1} parent=1 // pred_fallthru
      _
    // Predicated region
    $region6: #{tpu_custom_call.1} parent=1 // pred_check
      _
    $region7: #{tpu_custom_call.1} parent=1 // pred_check_branch
      %22 = sbr.rel (0) target = $region9
    $region8: #{tpu_custom_call.1} parent=1 // pred_region
      %24 = dma.done [#allocation3], 768
    $region9: #{tpu_custom_call.1} parent=1 // pred_fallthru
      _
    %v25 = vld [vmem:[#allocation2] sm:$0xff]
    %v26 = vmul.f32 %v25, 0.0214375
    %s27 = sadd.s32 0, 8
    %s28 = scalar_lea.vmem [#allocation2], %s27
    %v29 = vld [vmem:[%s28] sm:$0xff]
    %v30 = vmul.f32 %v29, 0.0214375
    %s31 = sadd.s32 0, 16
    %s32 = scalar_lea.vmem [#allocation2], %s31
    %v33 = vld [vmem:[%s32] sm:$0xff]
    %v34 = vmul.f32 %v33, 0.0214375
    %s35 = sadd.s32 0, 24
    %s36 = scalar_lea.vmem [#allocation2], %s35
    %v37 = vld [vmem:[%s36] sm:$0xff]
    %v38 = vmul.f32 %v37, 0.0214375
    %s39 = sadd.s32 0, 32
    %s40 = scalar_lea.vmem [#allocation2], %s39
    %v41 = vld [vmem:[%s40] sm:$0xff]
    %v42 = vmul.f32 %v41, 0.0214375
    %s43 = sadd.s32 0, 40
    %s44 = scalar_lea.vmem [#allocation2], %s43
    %v45 = vld [vmem:[%s44] sm:$0xff]
    %v46 = vmul.f32 %v45, 0.0214375
    %v47 = vmul.f32 %v26, %v26
    %v48 = vmul.f32 %v30, %v30
    %v49 = vmul.f32 %v34, %v34
    %v50 = vmul.f32 %v38, %v38
    %v51 = vmul.f32 %v42, %v42
    %v52 = vmul.f32 %v46, %v46
    %v53 = vsub.f32 -0.255, %v47
    %v54 = vsub.f32 -0.27499986, %v48
    %v55 = vsub.f32 -0.50499976, %v49
    %v56 = vsub.f32 -0.019999862, %v50
    %v57 = vmul.f32 %v38, 2.0
    %v58 = vmul.f32 %v57, %v26
    %v59 = vsub.f32 %v56, %v58
    %v60 = vsub.f32 -0.24999976, %v51
    %v61 = vmul.f32 %v42, 2.0
    %v62 = vmul.f32 %v61, %v26
    %v63 = vsub.f32 %v60, %v62
    %v64 = vsub.f32 -0.2299999, %v52
    %v65 = vmul.f32 %v46, 2.0
    %v66 = vmul.f32 %v65, %v30
    %v67 = vsub.f32 %v64, %v66
    %v68 = vmul.f32 %v26, 8.0
    %v69 = vmul.f32 %v30, 4.3999996
    %v70 = vmul.f32 %v34, 3.6000004
    %v71 = vmul.f32 %v38, -3.6000004
    %v72 = vmul.f32 %v42, -4.3999996
    %v73 = vmul.f32 %v46, -0.79999924
    %v74 = vadd.f32 %v68, %v69
    %v75 = vadd.f32 %v74, %v70
    %v76 = vadd.f32 %v75, %v71
    %v77 = vadd.f32 %v76, %v72
    %v78 = vadd.f32 %v77, %v73
    %v79 = vmul.f32 %v26, 0.8000002
    %v80 = vmul.f32 %v30, 6.3999996
    %v81 = vmul.f32 %v34, 2.3999996
    %v82 = vmul.f32 %v38, 5.5999994
    %v83 = vmul.f32 %v42, 1.5999994
    %v84 = vmul.f32 %v46, -4.0
    %v85 = vadd.f32 %v79, %v80
    %v86 = vadd.f32 %v85, %v81
    %v87 = vadd.f32 %v86, %v82
    %v88 = vadd.f32 %v87, %v83
    %v89 = vadd.f32 %v88, %v84
    %v90 = vmul.f32 %v26, 0.39999962
    %v91 = vmul.f32 %v30, -0.4000001
    %v92 = vmul.f32 %v34, 5.2
    %v93 = vmul.f32 %v38, -0.7999997
    %v94 = vmul.f32 %v42, 4.8
    %v95 = vmul.f32 %v46, 5.6
    %v96 = vadd.f32 %v90, %v91
    %v97 = vadd.f32 %v96, %v92
    %v98 = vadd.f32 %v97, %v93
    %v99 = vadd.f32 %v98, %v94
    %v100 = vadd.f32 %v99, %v95
    %v101 = vmul.f32 %v53, 4.0
    %v102 = vmul.f32 %v54, 2.1999998
    %v103 = vmul.f32 %v55, 1.8000002
    %v104 = vmul.f32 %v59, -1.8000002
    %v105 = vmul.f32 %v63, -2.1999998
    %v106 = vmul.f32 %v67, -0.39999962
    %v107 = vadd.f32 %v101, %v102
    %v108 = vadd.f32 %v107, %v103
    %v109 = vadd.f32 %v108, %v104
    %v110 = vadd.f32 %v109, %v105
    %v111 = vadd.f32 %v110, %v106
    %v112 = vmul.f32 %v53, 0.4000001
    %v113 = vmul.f32 %v54, 3.1999998
    %v114 = vmul.f32 %v55, 1.1999998
    %v115 = vmul.f32 %v59, 2.7999997
    %v116 = vmul.f32 %v63, 0.7999997
    %v117 = vmul.f32 %v67, -2.0
    %v118 = vadd.f32 %v112, %v113
    %v119 = vadd.f32 %v118, %v114
    %v120 = vadd.f32 %v119, %v115
    %v121 = vadd.f32 %v120, %v116
    %v122 = vadd.f32 %v121, %v117
    %v123 = vmul.f32 %v53, 0.19999981
    %v124 = vmul.f32 %v54, -0.20000005
    %v125 = vmul.f32 %v55, 2.6
    %v126 = vmul.f32 %v59, -0.39999986
    %v127 = vmul.f32 %v63, 2.4
    %v128 = vmul.f32 %v67, 2.8
    %v129 = vadd.f32 %v123, %v124
    %v130 = vadd.f32 %v129, %v125
    %v131 = vadd.f32 %v130, %v126
    %v132 = vadd.f32 %v131, %v127
    %v133 = vadd.f32 %v132, %v128
    %v134 = vadd.f32 %v47, %v48
    %v135 = vadd.f32 %v134, %v49
    %v136 = vadd.f32 %v135, %v50
    %v137 = vadd.f32 %v136, %v51
    %v138 = vadd.f32 %v137, %v52
    %v139 = vmul.f32 %v138, 4.0
    %v140 = vmul.f32 %v26, %v53
    %v141 = vmul.f32 %v30, %v54
    %v142 = vmul.f32 %v34, %v55
    %v143 = vmul.f32 %v38, %v59
    %v144 = vmul.f32 %v42, %v63
    %v145 = vmul.f32 %v46, %v67
    %v146 = vadd.f32 %v140, %v141
    %v147 = vadd.f32 %v146, %v142
    %v148 = vadd.f32 %v147, %v143
    %v149 = vadd.f32 %v148, %v144
    %v150 = vadd.f32 %v149, %v145
    %v151 = vmul.f32 %v150, 2.0
    %v152 = vmul.f32 %v111, 0.03187687
    %v153 = vmul.f32 %v122, -0.0062629976
    %v154 = vadd.f32 %v152, %v153
    %v155 = vmul.f32 %v133, 0.00030932325
    %v156 = vadd.f32 %v154, %v155
    %v157 = vmul.f32 %v111, -0.0062629976
    %v158 = vmul.f32 %v122, 0.04276493
    %v159 = vadd.f32 %v157, %v158
    %v160 = vmul.f32 %v133, 0.00445559
    %v161 = vadd.f32 %v159, %v160
    %v162 = vmul.f32 %v111, 0.00030932325
    %v163 = vmul.f32 %v122, 0.00445559
    %v164 = vadd.f32 %v162, %v163
    %v165 = vmul.f32 %v133, 0.04903779
    %v166 = vadd.f32 %v164, %v165
    %v167 = vmul.f32 %v78, 0.03187687
    %v168 = vmul.f32 %v89, -0.0062629976
    %v169 = vadd.f32 %v167, %v168
    %v170 = vmul.f32 %v100, 0.00030932325
    %v171 = vadd.f32 %v169, %v170
    %v172 = vmul.f32 %v78, -0.0062629976
    %v173 = vmul.f32 %v89, 0.04276493
    %v174 = vadd.f32 %v172, %v173
    %v175 = vmul.f32 %v100, 0.00445559
    %v176 = vadd.f32 %v174, %v175
    %v177 = vmul.f32 %v78, 0.00030932325
    %v178 = vmul.f32 %v89, 0.00445559
    %v179 = vadd.f32 %v177, %v178
    %v180 = vmul.f32 %v100, 0.04903779
    %v181 = vadd.f32 %v179, %v180
    %v182 = vmul.f32 %v78, %v156
    %v183 = vmul.f32 %v89, %v161
    %v184 = vadd.f32 %v182, %v183
    %v185 = vmul.f32 %v100, %v166
    %v186 = vadd.f32 %v184, %v185
    %v187 = vmul.f32 %v78, %v171
    %v188 = vmul.f32 %v89, %v176
    %v189 = vadd.f32 %v187, %v188
    %v190 = vmul.f32 %v100, %v181
    %v191 = vadd.f32 %v189, %v190
    %v192 = vsub.f32 %v139, %v191
    %v193 = vrcp.pop %v192
    %v194 = vmul.f32 %v192, %v193
    %v195 = vsub.f32 2.0, %v194
    %v196 = vmul.f32 %v193, %v195
    %v197 = vsub.f32 %v151, %v186
    %v198 = vmul.f32 %v197, %v196
    %v199 = vmul.f32 %v171, %v198
    %v200 = vsub.f32 %v156, %v199
    %v201 = vmul.f32 %v176, %v198
    %v202 = vsub.f32 %v161, %v201
    %v203 = vmul.f32 %v181, %v198
    %v204 = vsub.f32 %v166, %v203
    %v205 = vmul.f32 %v198, %v198
    %v206 = vsub.f32 %v200, -1.0
    %v207 = vmul.f32 %v206, %v206
    %v208 = vsub.f32 %v205, %v207
    %v209 = vsub.f32 %v202, -0.5999999
    %v210 = vmul.f32 %v209, %v209
    %v211 = vsub.f32 %v208, %v210
    %v212 = vsub.f32 %v204, -0.32499993
    %v213 = vmul.f32 %v212, %v212
    %v214 = vsub.f32 %v211, %v213
    %v215 = vrsqrt.pop %v214
    %v216 = vmul.f32 %v215, %v214
    %v217 = vmul.f32 %v216, %v215
    %v218 = vmul.f32 0.5, %v217
    %v219 = vsub.f32 1.5, %v218
    %v220 = vmul.f32 %v215, %v219
    %v221 = vmul.f32 %v214, %v220
    %vm222 = vcmp.eq.f32.partialorder %v214, inf
    %v223 = vsel %vm222, %v214, %v221
    %vm224 = vcmp.eq.f32.partialorder %v214, 0.0
    %v225 = vand.u32 %v214, 2147483648
    %v226 = vsel %vm224, %v225, %v223
    %vm227 = vcmp.ne.f32.partialorder %v226, %v226
    %v228 = vsel %vm227, 0.0, %v226
    %v229 = vmax.f32 %v228, -3.4028235e+38
    %v230 = vmin.f32 %v229, 3.4028235e+38
    %v231 = vadd.f32 %v230, 3.0
    %v232 = vmax.f32 %v231, 0.0
    %v233 = vmin.f32 %v232, 6.0
    %v234 = vsub.f32 %v233, 3.0
    %235 = vst [vmem:[#allocation5] sm:$0xff] %v234
    %vm236 = vcmp.ne.f32.partialorder %v202, %v202
    %v237 = vsel %vm236, 0.0, %v202
    %v238 = vmax.f32 %v237, -3.4028235e+38
    %v239 = vmin.f32 %v238, 3.4028235e+38
    %v240 = vadd.f32 %v239, 2.6
    %v241 = vmax.f32 %v240, 0.0
    %v242 = vmin.f32 %v241, 5.0
    %v243 = vsub.f32 %v242, 2.6
    %s244 = scalar_lea.vmem [#allocation5], %s27
    %245 = vst [vmem:[%s244] sm:$0xff] %v243
    %vm246 = vcmp.ne.f32.partialorder %v204, %v204
    %v247 = vsel %vm246, 0.0, %v204
    %v248 = vmax.f32 %v247, -3.4028235e+38
    %v249 = vmin.f32 %v248, 3.4028235e+38
    %v250 = vadd.f32 %v249, 1.525
    %v251 = vmax.f32 %v250, 0.0
    %v252 = vmin.f32 %v251, 3.0
    %v253 = vsub.f32 %v252, 1.525
    %s254 = scalar_lea.vmem [#allocation5], %s31
    %255 = vst [vmem:[%s254] sm:$0xff] %v253
    // Predicated region
    $region10: #{tpu_custom_call.1} parent=1 // pred_check
      _
    $region11: #{tpu_custom_call.1} parent=1 // pred_check_branch
      %257 = sbr.rel (0) target = $region13
    $region12: #{tpu_custom_call.1} parent=1 // pred_region
      %259 = vsyncadd [#allocation4], 0
      %s260 = sshll.u32 [#allocation5], 4
      %s261 = int_to_ptr.vmem [resolvable:$true] %s260
      %s262 = sshll.u32 %s1, 4
      %s263 = int_to_ptr.hbm [resolvable:$true] %s262
      %268 = dma.vmem_to_hbm [thread:$0]  %s261, 384, %s263, [#allocation4], 128, 128, 8
    $region13: #{tpu_custom_call.1} parent=1 // pred_fallthru
      _
    // Predicated region
    $region14: #{tpu_custom_call.1} parent=1 // pred_check
      _
    $region15: #{tpu_custom_call.1} parent=1 // pred_check_branch
      %270 = sbr.rel (0) target = $region17
    $region16: #{tpu_custom_call.1} parent=1 // pred_region
      %272 = dma.done [#allocation4], 384
    $region17: #{tpu_custom_call.1} parent=1 // pred_fallthru
      _
    %273 = vsyncpa [#allocation3], 1
    %274 = vsyncpa [#allocation4], 1

</llo_original>
